<compile_context>
chip_gen: v7x
topology: tpu7x:2x2x1
jax: 0.10.0
libtpu: 0.0.40
codegen_flags: <defaults>
</compile_context>

<pallas_src>
import functools

import jax
import jax.numpy as jnp
from jax.experimental import pallas as pl
from jax.experimental.pallas import tpu as pltpu

EPS = 1e-5


# ---------------------------------------------------------------------------
# In-kernel helpers
# ---------------------------------------------------------------------------
def _conv3_nobias(h, wstack, L_valid):
    """k=3 'same' conv (no bias) via output-side shifts.

    h:      (C_in, Lp) f32, columns >= L_valid are zero.
    wstack: (3*C_out, C_in) f32, rows = [W_k0; W_k1; W_k2].
    Returns (C_out, Lp) f32 with columns >= L_valid zero, where
      u[:, l] = W_k0 @ h[:, l-1] + W_k1 @ h[:, l] + W_k2 @ h[:, l+1]
    using zero padding outside [0, L_valid).
    """
    Cout = wstack.shape[0] // 3
    Lp = h.shape[1]
    # One stacked MXU matmul instead of three; the tap shift commutes with the
    # channel contraction, so shifts are applied to the (Cout, Lp) results.
    z = jnp.dot(wstack, h, preferred_element_type=jnp.float32)      # (3*Cout, Lp)
    z0, z1, z2 = z[:Cout], z[Cout:2 * Cout], z[2 * Cout:]
    lane = jax.lax.broadcasted_iota(jnp.int32, (Cout, Lp), 1)
    # u[l] += z0[l-1]   (zero at l == 0       : left zero-pad of the conv)
    t0 = jnp.where(lane == 0, 0.0, pltpu.roll(z0, shift=1, axis=1))
    # u[l] += z2[l+1]   (zero at l == L_valid-1: right zero-pad of the conv)
    t2 = jnp.where(lane == L_valid - 1, 0.0, pltpu.roll(z2, shift=Lp - 1, axis=1))
    u = t0 + z1 + t2
    # Keep the lane-padding columns exactly zero (stats + next conv rely on it).
    return jnp.where(lane < L_valid, u, 0.0)


# ---------------------------------------------------------------------------
# Kernels
# ---------------------------------------------------------------------------
def _conv1_stats_kernel(x_ref, w1_ref, sum_ref, ssq_ref, *, L_valid, Bt):
    """Pass 1: conv1 (bias-free) -> per-channel sum / sumsq only."""
    @pl.when(pl.program_id(1) == 0)
    def _init():
        sum_ref[...] = jnp.zeros_like(sum_ref)
        ssq_ref[...] = jnp.zeros_like(ssq_ref)

    w1 = w1_ref[...]
    for b in range(Bt):                       # Bt is a small static constant
        h = x_ref[b].astype(jnp.float32)      # (Cin, Lp)
        u1 = _conv3_nobias(h, w1, L_valid)    # (Cout, Lp), pads zero
        sum_ref[...] += jnp.sum(u1, axis=1, keepdims=True)
        ssq_ref[...] += jnp.sum(u1 * u1, axis=1, keepdims=True)


def _fused_conv_kernel(x_ref, w1_ref, s1_ref, t1_ref, w2_ref,
                       y_ref, sum_ref, ssq_ref, *, L_valid, Bt):
    """Pass 2: recompute conv1, folded BN1 + ReLU, conv2, stats, y2 (bf16)."""
    @pl.when(pl.program_id(1) == 0)
    def _init():
        sum_ref[...] = jnp.zeros_like(sum_ref)
        ssq_ref[...] = jnp.zeros_like(ssq_ref)

    w1 = w1_ref[...]
    w2 = w2_ref[...]
    s1 = s1_ref[...]                          # (Cout, 1) folded BN1 scale
    t1 = t1_ref[...]                          # (Cout, 1) folded BN1 shift
    Cout = s1.shape[0]
    Lp = x_ref.shape[-1]
    lane = jax.lax.broadcasted_iota(jnp.int32, (Cout, Lp), 1)

    for b in range(Bt):
        h = x_ref[b].astype(jnp.float32)
        u1 = _conv3_nobias(h, w1, L_valid)            # conv1 recomputed (cheap)
        h1 = jnp.maximum(u1 * s1 + t1, 0.0)           # folded BN1 + ReLU (one FMA)
        h1 = jnp.where(lane < L_valid, h1, 0.0)       # re-zero lane padding
        u2 = _conv3_nobias(h1, w2, L_valid)           # conv2 (bias folded into BN2)
        y_ref[b] = u2.astype(y_ref.dtype)             # bf16 write-back
        sum_ref[...] += jnp.sum(u2, axis=1, keepdims=True)
        ssq_ref[...] += jnp.sum(u2 * u2, axis=1, keepdims=True)


def _bn_relu_kernel(y_ref, s_ref, t_ref, o_ref, *, Bt):
    """Pass 3: folded BN2 + ReLU."""
    s = s_ref[...]
    t = t_ref[...]
    for b in range(Bt):
        h = y_ref[b].astype(jnp.float32)
        o_ref[b] = jnp.maximum(h * s + t, 0.0).astype(o_ref.dtype)


# ---------------------------------------------------------------------------
# pallas_call wrappers
# ---------------------------------------------------------------------------
def _vmem_limit_bytes(*block_bytes):
    # Double-buffered pipeline blocks + in-kernel temporaries + headroom,
    # clamped to a range that is valid on v5e/v6e (128 MiB) and v7x (64 MiB).
    est = 2 * sum(int(b) for b in block_bytes) + (8 << 20)
    return int(min(max(est, 32 << 20), 48 << 20))


def _param_spec(shape):
    # Small resident parameter: full-array block, same block for every step.
    return pl.BlockSpec(shape, lambda *_: (0,) * len(shape))


def _conv1_stats_call(x, w1s, *, ncores, steps, Bt, L_valid):
    B, Cin, Lp = x.shape
    Cout = w1s.shape[0] // 3
    kernel = functools.partial(_conv1_stats_kernel, L_valid=L_valid, Bt=Bt)
    vmem = _vmem_limit_bytes(Bt * Cin * Lp * 4,            # x block
                             6 * Cout * Lp * 4)            # z/u temporaries
    return pl.pallas_call(
        kernel,
        grid=(ncores, steps),
        in_specs=[
            pl.BlockSpec((Bt, Cin, Lp), lambda c, s: (c * steps + s, 0, 0)),
            _param_spec(w1s.shape),
        ],
        out_specs=[
            pl.BlockSpec((None, Cout, 1), lambda c, s: (c, 0, 0)),   # per-core sum
            pl.BlockSpec((None, Cout, 1), lambda c, s: (c, 0, 0)),   # per-core ssq
        ],
        out_shape=[
            jax.ShapeDtypeStruct((ncores, Cout, 1), jnp.float32),
            jax.ShapeDtypeStruct((ncores, Cout, 1), jnp.float32),
        ],
        compiler_params=pltpu.CompilerParams(
            dimension_semantics=("parallel", "arbitrary"),
            vmem_limit_bytes=vmem),
    )(x, w1s)


def _fused_call(x, w1s, s1, t1, w2s, *, ncores, steps, Bt, L_valid, inter_dtype):
    B, Cin, Lp = x.shape
    Cout = w2s.shape[0] // 3
    kernel = functools.partial(_fused_conv_kernel, L_valid=L_valid, Bt=Bt)
    inter_bytes = jnp.dtype(inter_dtype).itemsize
    vmem = _vmem_limit_bytes(Bt * Cin * Lp * 4,            # x block
                             Bt * Cout * Lp * inter_bytes, # y2 block
                             10 * Cout * Lp * 4)           # z/u/h1 temporaries
    return pl.pallas_call(
        kernel,
        grid=(ncores, steps),
        in_specs=[
            pl.BlockSpec((Bt, Cin, Lp), lambda c, s: (c * steps + s, 0, 0)),
            _param_spec(w1s.shape),
            _param_spec(s1.shape),
            _param_spec(t1.shape),
            _param_spec(w2s.shape),
        ],
        out_specs=[
            pl.BlockSpec((Bt, Cout, Lp), lambda c, s: (c * steps + s, 0, 0)),
            pl.BlockSpec((None, Cout, 1), lambda c, s: (c, 0, 0)),
            pl.BlockSpec((None, Cout, 1), lambda c, s: (c, 0, 0)),
        ],
        out_shape=[
            jax.ShapeDtypeStruct((B, Cout, Lp), inter_dtype),
            jax.ShapeDtypeStruct((ncores, Cout, 1), jnp.float32),
            jax.ShapeDtypeStruct((ncores, Cout, 1), jnp.float32),
        ],
        compiler_params=pltpu.CompilerParams(
            dimension_semantics=("parallel", "arbitrary"),
            vmem_limit_bytes=vmem),
    )(x, w1s, s1, t1, w2s)


def _bn_relu_call(y, s2, t2, out_dtype, *, Bt):
    B, Cout, Lp = y.shape
    kernel = functools.partial(_bn_relu_kernel, Bt=Bt)
    vmem = _vmem_limit_bytes(Bt * Cout * Lp * y.dtype.itemsize,
                             Bt * Cout * Lp * jnp.dtype(out_dtype).itemsize)
    return pl.pallas_call(
        kernel,
        grid=(B // Bt,),
        in_specs=[
            pl.BlockSpec((Bt, Cout, Lp), lambda i: (i, 0, 0)),
            _param_spec(s2.shape),
            _param_spec(t2.shape),
        ],
        out_specs=pl.BlockSpec((Bt, Cout, Lp), lambda i: (i, 0, 0)),
        out_shape=jax.ShapeDtypeStruct((B, Cout, Lp), out_dtype),
        compiler_params=pltpu.CompilerParams(
            dimension_semantics=("parallel",),
            vmem_limit_bytes=vmem),
    )(y, s2, t2)


# ---------------------------------------------------------------------------
# BN fold (tiny JAX glue) and top-level block
# ---------------------------------------------------------------------------
def _fold_bn(psum, pssq, count, gamma, beta):
    """Fold train-mode BN into per-channel (scale, shift).

    psum/pssq: (ncores, Cout, 1) per-core partial sums of the *bias-free*
    conv output over the valid (N, L) extent.  Under training-mode BN the
    conv bias cancels exactly (removed by the mean subtraction), so
      BN(u + b) = u * scale + (beta - mean(u) * scale).
    """
    s = jnp.sum(psum, axis=0)                       # reduce per-core partials
    q = jnp.sum(pssq, axis=0)
    mean_u = s / count
    # Single-pass variance; clamp tiny negatives from f32 cancellation.
    # TODO(synk): per-tile Chan/Welford combine for extreme (B*L, |mean|) regimes.
    var = jnp.maximum(q / count - mean_u * mean_u, 0.0)
    scale = gamma.reshape(-1, 1).astype(jnp.float32) * jax.lax.rsqrt(var + EPS)
    shift = beta.reshape(-1, 1).astype(jnp.float32) - mean_u * scale
    return scale, shift


def encoder_block(x_ncl, params, *, intermediate_dtype=jnp.bfloat16):
    """x_ncl: (B, Cin, L) in PyTorch NCL layout.  Returns (B, Cout, L)."""
    w1, b1, g1, be1, w2, b2, g2, be2 = params   # PyTorch shapes: w = (Cout, Cin, 3)
    # b1, b2 cancel exactly under training-mode BatchNorm (see _fold_bn).
    del b1, b2
    B, Cin, L = x_ncl.shape
    Cout = w1.shape[0]
    f32 = jnp.float32

    # Lane-dense layout: pad L up to a multiple of 128 (vreg lane width).
    # TODO(synk): for very long L, add an L-tile grid axis with a 1-column halo
    # to bound per-step VMEM on v7x; not needed at these sizes.
    Lp = max(128, ((L + 127) // 128) * 128)
    x = x_ncl.astype(f32)
    if Lp != L:
        x = jnp.pad(x, ((0, 0), (0, 0), (0, Lp - L)))

    # Tap-stacked weights (3*Cout, C): rows [W_k0; W_k1; W_k2].
    w1s = jnp.transpose(w1, (2, 0, 1)).reshape(3 * Cout, Cin).astype(f32)
    w2s = jnp.transpose(w2, (2, 0, 1)).reshape(3 * Cout, Cout).astype(f32)

    # Grid layout: leading "parallel" core axis (megacore on v7x) x sequential
    # batch steps ("arbitrary", since BN stats accumulate across them).
    ncores = 2 if (B % 2 == 0 and B >= 2) else 1
    bpc = B // ncores
    # Batch elements per grid step: amortise the ~0.35us/step overhead while
    # keeping the pipelined I/O blocks a few MiB.
    io_bytes = Lp * (Cin * 4 + Cout * jnp.dtype(intermediate_dtype).itemsize)
    cap = max(1, (4 << 20) // max(io_bytes, 1))
    Bt = 1
    for d in range(min(bpc, cap), 0, -1):
        if bpc % d == 0:
            Bt = d
            break
    steps = bpc // Bt
    n_valid = B * L

    # Pass 1: conv1 statistics only (no activation write-back to HBM).
    sum1, ssq1 = _conv1_stats_call(x, w1s, ncores=ncores, steps=steps,
                                   Bt=Bt, L_valid=L)
    s1, t1 = _fold_bn(sum1, ssq1, n_valid, g1, be1)

    # Pass 2: recompute conv1, fold BN1+ReLU, conv2, y2 (bf16) + stats.
    y2, sum2, ssq2 = _fused_call(x, w1s, s1, t1, w2s, ncores=ncores, steps=steps,
                                 Bt=Bt, L_valid=L, inter_dtype=intermediate_dtype)
    s2, t2 = _fold_bn(sum2, ssq2, n_valid, g2, be2)

    # Pass 3: folded BN2 + ReLU.
    out = _bn_relu_call(y2, s2, t2, x_ncl.dtype, Bt=Bt)
    return out[:, :, :L]


# ---------------------------------------------------------------------------
# Pure-JAX reference (PyTorch semantics: NCL, train-mode BN) and self-test
# ---------------------------------------------------------------------------
def _reference(x_ncl, params):
    w1, b1, g1, be1, w2, b2, g2, be2 = params

    def conv(x, w, b):
        y = jax.lax.conv_general_dilated(
            x.astype(jnp.float32), w.astype(jnp.float32),
            window_strides=(1,), padding=[(1, 1)],
            dimension_numbers=('NCH', 'OIH', 'NCH'))
        return y + b[None, :, None]

    def bn_relu(y, g, be):
        mean = jnp.mean(y, axis=(0, 2), keepdims=True)
        var = jnp.mean((y - mean) ** 2, axis=(0, 2), keepdims=True)
        yn = (y - mean) / jnp.sqrt(var + EPS)
        yn = yn * g[None, :, None] + be[None, :, None]
        return jnp.maximum(yn, 0.0)

    h = bn_relu(conv(x_ncl, w1, b1), g1, be1)
    return bn_relu(conv(h, w2, b2), g2, be2)


if __name__ == "__main__":
    B, Cin, Cout, L = 2, 4, 8, 16

    key = jax.random.PRNGKey(0)
    ks = jax.random.split(key, 9)
    w1 = 0.2 * jax.random.normal(ks[0], (Cout, Cin, 3), jnp.float32)
    b1 = 0.1 * jax.random.normal(ks[1], (Cout,), jnp.float32)
    g1 = 1.0 + 0.1 * jax.random.normal(ks[2], (Cout,), jnp.float32)
    be1 = 0.1 * jax.random.normal(ks[3], (Cout,), jnp.float32)
    w2 = 0.2 * jax.random.normal(ks[4], (Cout, Cout, 3), jnp.float32)
    b2 = 0.1 * jax.random.normal(ks[5], (Cout,), jnp.float32)
    g2 = 1.0 + 0.1 * jax.random.normal(ks[6], (Cout,), jnp.float32)
    be2 = 0.1 * jax.random.normal(ks[7], (Cout,), jnp.float32)
    params = (w1, b1, g1, be1, w2, b2, g2, be2)

    x = jax.random.normal(ks[8], (B, Cin, L), jnp.float32)   # NCL like PyTorch

    out = jax.block_until_ready(encoder_block(x, params))
    ref = jax.block_until_ready(_reference(x, params))

    assert out.shape == (B, Cout, L)
    # Tolerance is loosened vs a pure-f32 pipeline: the y2 intermediate is
    # stored as bf16 (per perf review) and TPU matmul/conv default precision
    # differs slightly between the kernel and the XLA reference.
    err = float(jnp.max(jnp.abs(out - ref)))
    assert jnp.allclose(out, ref, atol=3e-2, rtol=3e-2), f"max abs err {err}"
    print("KERNEL_OK")
</pallas_src>

<mosaic_0001>
module attributes {stable_mosaic.version = 11 : i64} {
  func.func @_conv1_stats_kernel(%arg0: i32, %arg1: i32, %arg2: memref<1x4x128xf32, #tpu.memory_space<vmem>>, %arg3: memref<24x4xf32, #tpu.memory_space<vmem>>, %arg4: memref<1x8x1xf32, #tpu.memory_space<vmem>>, %arg5: memref<1x8x1xf32, #tpu.memory_space<vmem>>) attributes {dimension_semantics = [#tpu.dimension_semantics<parallel>, #tpu.dimension_semantics<arbitrary>], iteration_bounds = array<i64: 2, 1>, scalar_prefetch = 0 : i64, scratch_operands = 0 : i64, tpu.core_type = #tpu.core_type<tc>, window_params = [{transform_indices = @transform_0, window_bounds = array<i64: 1, 4, 128>}, {pipeline_mode = #tpu.pipeline_mode<synchronous>, transform_indices = @transform_1, window_bounds = array<i64: 24, 4>}, {transform_indices = @transform_2, window_bounds = array<i64: 1, 8, 1>}, {transform_indices = @transform_3, window_bounds = array<i64: 1, 8, 1>}]} {
    %c0_i32 = arith.constant 0 : i32
    %0 = arith.cmpi eq, %arg1, %c0_i32 : i32
    %1 = arith.extui %0 : i1 to i32
    %c0_i32_0 = arith.constant 0 : i32
    %2 = arith.cmpi ne, %1, %c0_i32_0 : i32
    scf.if %2 {
      %cst_23 = arith.constant 0.000000e+00 : f32
      %44 = vector.broadcast %cst_23 : f32 to vector<8x1xf32>
      %c0_24 = arith.constant 0 : index
      %c0_25 = arith.constant 0 : index
      %c0_26 = arith.constant 0 : index
      %45 = vector.load %arg4[%c0_24, %c0_25, %c0_26] : memref<1x8x1xf32, #tpu.memory_space<vmem>>, vector<1x8x1xf32>
      %46 = vector.shape_cast %45 : vector<1x8x1xf32> to vector<8x1xf32>
      %47 = vector.shape_cast %44 : vector<8x1xf32> to vector<1x8x1xf32>
      tpu.vector_store %arg4[%c0_24, %c0_25, %c0_26], %47 {strides = array<i32>} : memref<1x8x1xf32, #tpu.memory_space<vmem>>, vector<1x8x1xf32>,
      %cst_27 = arith.constant 0.000000e+00 : f32
      %48 = vector.broadcast %cst_27 : f32 to vector<8x1xf32>
      %c0_28 = arith.constant 0 : index
      %c0_29 = arith.constant 0 : index
      %c0_30 = arith.constant 0 : index
      %49 = vector.load %arg5[%c0_28, %c0_29, %c0_30] : memref<1x8x1xf32, #tpu.memory_space<vmem>>, vector<1x8x1xf32>
      %50 = vector.shape_cast %49 : vector<1x8x1xf32> to vector<8x1xf32>
      %51 = vector.shape_cast %48 : vector<8x1xf32> to vector<1x8x1xf32>
      tpu.vector_store %arg5[%c0_28, %c0_29, %c0_30], %51 {strides = array<i32>} : memref<1x8x1xf32, #tpu.memory_space<vmem>>, vector<1x8x1xf32>,
    } else {
    }
    %c0 = arith.constant 0 : index
    %c0_1 = arith.constant 0 : index
    %3 = vector.load %arg3[%c0, %c0_1] : memref<24x4xf32, #tpu.memory_space<vmem>>, vector<24x4xf32>
    %c0_2 = arith.constant 0 : index
    %c0_3 = arith.constant 0 : index
    %c0_4 = arith.constant 0 : index
    %4 = vector.load %arg2[%c0_2, %c0_3, %c0_4] : memref<1x4x128xf32, #tpu.memory_space<vmem>>, vector<1x4x128xf32>
    %5 = vector.shape_cast %4 : vector<1x4x128xf32> to vector<4x128xf32>
    %cst = arith.constant dense<0.000000e+00> : vector<24x128xf32>
    %6 = tpu.matmul %3, %5, %cst {dimension_numbers = #tpu.dot_dimension_numbers<[1], [0], [0], [1], [0, 0, 1, 1], [], []>} : vector<24x4xf32>, vector<4x128xf32>, vector<24x128xf32> -> vector<24x128xf32>
    %7 = vector.extract_strided_slice %6 {offsets = [0, 0], sizes = [8, 128], strides = [1, 1]} : vector<24x128xf32> to vector<8x128xf32>
    %8 = vector.extract_strided_slice %6 {offsets = [8, 0], sizes = [8, 128], strides = [1, 1]} : vector<24x128xf32> to vector<8x128xf32>
    %9 = vector.extract_strided_slice %6 {offsets = [16, 0], sizes = [8, 128], strides = [1, 1]} : vector<24x128xf32> to vector<8x128xf32>
    %10 = tpu.iota {dimensions = array<i32: 1>} : vector<8x128xi32>
    %c0_i32_5 = arith.constant 0 : i32
    %11 = vector.broadcast %c0_i32_5 : i32 to vector<8x128xi32>
    %12 = arith.cmpi eq, %10, %11 : vector<8x128xi32>
    %c1_i32 = arith.constant 1 : i32
    %13 = tpu.dynamic_rotate %7 by %c1_i32 dim 1 : vector<8x128xf32>, i32 -> vector<8x128xf32>
    %cst_6 = arith.constant 0.000000e+00 : f32
    %14 = vector.broadcast %cst_6 : f32 to vector<8x128xf32>
    %15 = arith.select %12, %14, %13 : vector<8x128xi1>, vector<8x128xf32>
    %c15_i32 = arith.constant 15 : i32
    %16 = vector.broadcast %c15_i32 : i32 to vector<8x128xi32>
    %17 = arith.cmpi eq, %10, %16 : vector<8x128xi32>
    %c127_i32 = arith.constant 127 : i32
    %18 = tpu.dynamic_rotate %9 by %c127_i32 dim 1 : vector<8x128xf32>, i32 -> vector<8x128xf32>
    %cst_7 = arith.constant 0.000000e+00 : f32
    %19 = vector.broadcast %cst_7 : f32 to vector<8x128xf32>
    %20 = arith.select %17, %19, %18 : vector<8x128xi1>, vector<8x128xf32>
    %21 = arith.addf %15, %8 : vector<8x128xf32>
    %22 = arith.addf %21, %20 : vector<8x128xf32>
    %c16_i32 = arith.constant 16 : i32
    %23 = vector.broadcast %c16_i32 : i32 to vector<8x128xi32>
    %24 = arith.cmpi slt, %10, %23 : vector<8x128xi32>
    %cst_8 = arith.constant 0.000000e+00 : f32
    %25 = vector.broadcast %cst_8 : f32 to vector<8x128xf32>
    %26 = arith.select %24, %22, %25 : vector<8x128xi1>, vector<8x128xf32>
    %c0_9 = arith.constant 0 : index
    %c0_10 = arith.constant 0 : index
    %c0_11 = arith.constant 0 : index
    %27 = vector.load %arg4[%c0_9, %c0_10, %c0_11] : memref<1x8x1xf32, #tpu.memory_space<vmem>>, vector<1x8x1xf32>
    %28 = vector.shape_cast %27 : vector<1x8x1xf32> to vector<8x1xf32>
    %cst_12 = arith.constant dense<0.000000e+00> : vector<8xf32>
    %29 = vector.multi_reduction <add>, %26, %cst_12 [1] : vector<8x128xf32> to vector<8xf32>
    %30 = vector.shape_cast %29 : vector<8xf32> to vector<8x1xf32>
    %31 = arith.addf %28, %30 : vector<8x1xf32>
    %c0_13 = arith.constant 0 : index
    %c0_14 = arith.constant 0 : index
    %c0_15 = arith.constant 0 : index
    %32 = vector.load %arg4[%c0_13, %c0_14, %c0_15] : memref<1x8x1xf32, #tpu.memory_space<vmem>>, vector<1x8x1xf32>
    %33 = vector.shape_cast %32 : vector<1x8x1xf32> to vector<8x1xf32>
    %34 = vector.shape_cast %31 : vector<8x1xf32> to vector<1x8x1xf32>
    tpu.vector_store %arg4[%c0_13, %c0_14, %c0_15], %34 {strides = array<i32>} : memref<1x8x1xf32, #tpu.memory_space<vmem>>, vector<1x8x1xf32>,
    %c0_16 = arith.constant 0 : index
    %c0_17 = arith.constant 0 : index
    %c0_18 = arith.constant 0 : index
    %35 = vector.load %arg5[%c0_16, %c0_17, %c0_18] : memref<1x8x1xf32, #tpu.memory_space<vmem>>, vector<1x8x1xf32>
    %36 = vector.shape_cast %35 : vector<1x8x1xf32> to vector<8x1xf32>
    %37 = arith.mulf %26, %26 : vector<8x128xf32>
    %cst_19 = arith.constant dense<0.000000e+00> : vector<8xf32>
    %38 = vector.multi_reduction <add>, %37, %cst_19 [1] : vector<8x128xf32> to vector<8xf32>
    %39 = vector.shape_cast %38 : vector<8xf32> to vector<8x1xf32>
    %40 = arith.addf %36, %39 : vector<8x1xf32>
    %c0_20 = arith.constant 0 : index
    %c0_21 = arith.constant 0 : index
    %c0_22 = arith.constant 0 : index
    %41 = vector.load %arg5[%c0_20, %c0_21, %c0_22] : memref<1x8x1xf32, #tpu.memory_space<vmem>>, vector<1x8x1xf32>
    %42 = vector.shape_cast %41 : vector<1x8x1xf32> to vector<8x1xf32>
    %43 = vector.shape_cast %40 : vector<8x1xf32> to vector<1x8x1xf32>
    tpu.vector_store %arg5[%c0_20, %c0_21, %c0_22], %43 {strides = array<i32>} : memref<1x8x1xf32, #tpu.memory_space<vmem>>, vector<1x8x1xf32>,
    return
  }
  func.func @transform_0(%arg0: i32, %arg1: i32) -> (i32, i32, i32) {
    %c1_i32 = arith.constant 1 : i32
    %0 = arith.muli %arg0, %c1_i32 : i32
    %1 = arith.addi %0, %arg1 : i32
    %c0_i32 = arith.constant 0 : i32
    %c0_i32_0 = arith.constant 0 : i32
    %c0_i32_1 = arith.constant 0 : i32
    return %1, %c0_i32, %c0_i32_0 : i32, i32, i32
  }
  func.func @transform_1(%arg0: i32, %arg1: i32) -> (i32, i32) {
    %c0_i32 = arith.constant 0 : i32
    %c0_i32_0 = arith.constant 0 : i32
    %c0_i32_1 = arith.constant 0 : i32
    return %c0_i32, %c0_i32_0 : i32, i32
  }
  func.func @transform_2(%arg0: i32, %arg1: i32) -> (i32, i32, i32) {
    %c0_i32 = arith.constant 0 : i32
    %c0_i32_0 = arith.constant 0 : i32
    %c0_i32_1 = arith.constant 0 : i32
    return %arg0, %c0_i32, %c0_i32_0 : i32, i32, i32
  }
  func.func @transform_3(%arg0: i32, %arg1: i32) -> (i32, i32, i32) {
    %c0_i32 = arith.constant 0 : i32
    %c0_i32_0 = arith.constant 0 : i32
    %c0_i32_1 = arith.constant 0 : i32
    return %arg0, %c0_i32, %c0_i32_0 : i32, i32, i32
  }
}

</mosaic_0001>

<llo_original>
// kernel: tpu_custom_call.1
$region0: #{tpu_custom_call.1}
  #allocation0 [shape = 'u32[]', space=smem, size = 0x4, offset = 0x4, fixed_abs, tag = 'smem constant byte address 0x4 - core index']
  #allocation1 [shape = 'u32[144,128]{1,0:T(1,128)}', space=vmem, size = 0x12000, scoped, tag = 'internal scratch']
  %s0 = inlined_call_operand.vmem [shape: f32[2,4,128], index: 0, kind: input, shape index: {}]
  %s1 = inlined_call_operand.vmem [shape: f32[24,4], index: 1, kind: input, shape index: {}]
  %s2 = inlined_call_operand.vmem [shape: f32[2,8,1], index: 2, kind: output, shape index: {0}]
  %s3 = inlined_call_operand.vmem [shape: f32[2,8,1], index: 3, kind: output, shape index: {1}]
  %4 = xla_tuple %s2, %s3
  %s5 = sld [smem:[#allocation0]]
  $region53: #{tpu_custom_call.1} parent=0
    _
  %s7 = ssub.s32 1, %s5
  %s8 = scalar_select 0, %s7, %s5
  loop: start=0, step=1, limit=4
  $region2: #{tpu_custom_call.1} parent=0 // loop_pre_header
    _
  $region3: #{tpu_custom_call.1} parent=0 // loop_header
    %s10 = sphi 0, %s14
    %p11 = scmp.ge.s32.totalorder %s10, 4
    %s17 = sphi 0, %s29
    %s18 = sphi 0, %s25
    %s19 = sphi 0, %s17
    %s20 = sphi 0, %s18
    %s21 = sphi 0, %s19
    %s22 = sphi 0, %s20
    %s34 = sphi 0, %s36
    %s37 = sphi 0, %s34
    %s38 = sphi 0, %s37
    %s54 = sphi 0, %s38
    %s58 = sphi 0, %s58
    %s60 = sphi 0, %s58
    %s61 = sphi 0, %s60
    %s75 = sphi 0, %s61
    %s81 = sphi 0, %s83
    %s84 = sphi 0, %s81
    %s85 = sphi 0, %s84
    %s101 = sphi 0, %s85
    %s107 = sphi 0, %s109
    %s110 = sphi 0, %s107
    %s111 = sphi 0, %s110
    %s127 = sphi 0, %s111
  $region4: #{tpu_custom_call.1} parent=0 // loop_header_branch
    %13 = sbr.rel (%p11) target = $region8
  $region5: #{tpu_custom_call.1} parent=0 // loop_body
    %s15 = ssub.s32 %s10, 1
    %s16 = ssub.s32 %s10, 2
    %s23 = sadd.s32 1, %s18
    %p24 = scmp.ge.s32.totalorder %s23, 1
    %s25 = scalar_select %p24, 0, %s23
    %s26 = sadd.s32 1, %s17
    %s27 = scalar_select %p24, %s26, %s17
    %p28 = scmp.ge.s32.totalorder %s27, 2
    %s29 = scalar_select %p28, 0, %s27
    %s30 = sadd.s32 %s17, %s18
    %s31 = sadd.s32 %s29, %s25
    %s32 = ssub.s32 %s30, %s31
    %p33 = scmp.eq.s32.totalorder %s32, 0
    %s35 = sadd.s32 %s34, 1
    %s36 = scalar_select %p33, %s34, %s35
    %p39 = pneg %p33
    %p40 = scmp.eq.s32.totalorder %s10, 1
    %p41 = por %p39, %p40
    %p42 = scmp.ne.s32.totalorder %s34, %s37
    %p43 = scmp.eq.s32.totalorder %s10, 0
    %p44 = por %p42, %p43
    %p45 = scmp.ne.s32.totalorder %s34, %s37
    %p46 = scmp.eq.s32.totalorder %s15, 1
    %p47 = por %p45, %p46
    %p48 = scmp.ne.s32.totalorder %s37, %s38
    %p49 = scmp.eq.s32.totalorder %s15, 0
    %p50 = por %p48, %p49
    %p51 = scmp.ne.s32.totalorder %s37, %s38
    %p52 = scmp.eq.s32.totalorder %s16, 1
    %p53 = por %p51, %p52
    %p55 = scmp.ne.s32.totalorder %s38, %s54
    %p56 = scmp.eq.s32.totalorder %s16, 0
    %p57 = por %p55, %p56
    %s59 = sadd.s32 %s58, 1
    %p62 = scmp.eq.s32.totalorder %s10, 1
    %p63 = scmp.ne.s32.totalorder %s58, %s60
    %p64 = scmp.eq.s32.totalorder %s10, 0
    %p65 = por %p63, %p64
    %p66 = scmp.ne.s32.totalorder %s58, %s60
    %p67 = scmp.eq.s32.totalorder %s15, 1
    %p68 = por %p66, %p67
    %p69 = scmp.ne.s32.totalorder %s60, %s61
    %p70 = scmp.eq.s32.totalorder %s15, 0
    %p71 = por %p69, %p70
    %p72 = scmp.ne.s32.totalorder %s60, %s61
    %p73 = scmp.eq.s32.totalorder %s16, 1
    %p74 = por %p72, %p73
    %p76 = scmp.ne.s32.totalorder %s61, %s75
    %p77 = scmp.eq.s32.totalorder %s16, 0
    %p78 = por %p76, %p77
    %s79 = ssub.s32 %s17, %s29
    %p80 = scmp.eq.s32.totalorder %s79, 0
    %s82 = sadd.s32 %s81, 1
    %s83 = scalar_select %p80, %s81, %s82
    %p86 = pneg %p80
    %p87 = scmp.eq.s32.totalorder %s10, 1
    %p88 = por %p86, %p87
    %p89 = scmp.ne.s32.totalorder %s81, %s84
    %p90 = scmp.eq.s32.totalorder %s10, 0
    %p91 = por %p89, %p90
    %p92 = scmp.ne.s32.totalorder %s81, %s84
    %p93 = scmp.eq.s32.totalorder %s15, 1
    %p94 = por %p92, %p93
    %p95 = scmp.ne.s32.totalorder %s84, %s85
    %p96 = scmp.eq.s32.totalorder %s15, 0
    %p97 = por %p95, %p96
    %p98 = scmp.ne.s32.totalorder %s84, %s85
    %p99 = scmp.eq.s32.totalorder %s16, 1
    %p100 = por %p98, %p99
    %p102 = scmp.ne.s32.totalorder %s85, %s101
    %p103 = scmp.eq.s32.totalorder %s16, 0
    %p104 = por %p102, %p103
    %s105 = ssub.s32 %s17, %s29
    %p106 = scmp.eq.s32.totalorder %s105, 0
    %s108 = sadd.s32 %s107, 1
    %s109 = scalar_select %p106, %s107, %s108
    %p112 = pneg %p106
    %p113 = scmp.eq.s32.totalorder %s10, 1
    %p114 = por %p112, %p113
    %p115 = scmp.ne.s32.totalorder %s107, %s110
    %p116 = scmp.eq.s32.totalorder %s10, 0
    %p117 = por %p115, %p116
    %p118 = scmp.ne.s32.totalorder %s107, %s110
    %p119 = scmp.eq.s32.totalorder %s15, 1
    %p120 = por %p118, %p119
    %p121 = scmp.ne.s32.totalorder %s110, %s111
    %p122 = scmp.eq.s32.totalorder %s15, 0
    %p123 = por %p121, %p122
    %p124 = scmp.ne.s32.totalorder %s110, %s111
    %p125 = scmp.eq.s32.totalorder %s16, 1
    %p126 = por %p124, %p125
    %p128 = scmp.ne.s32.totalorder %s111, %s127
    %p129 = scmp.eq.s32.totalorder %s16, 0
    %p130 = por %p128, %p129
    %p131 = scmp.le.s32.totalorder 1, %s10
    %p132 = scmp.lt.s32.totalorder %s10, 3
    %p133 = pnand %p131, %p132
    %p134 = pneg %p133
    // Predicated region
    $region9: #{tpu_custom_call.1} parent=5 // pred_check
      _
    $region10: #{tpu_custom_call.1} parent=5 // pred_check_branch
      %136 = sbr.rel (%p133) target = $region12
    $region11: #{tpu_custom_call.1} parent=5 // pred_region
      %s137 = ssub.s32 %s10, 1
      // Predicated region
      $region13: #{tpu_custom_call.1} parent=11 // pred_check
        %p138 = pneg %p71
      $region14: #{tpu_custom_call.1} parent=11 // pred_check_branch
        %140 = sbr.rel (%p138) target = $region16
      $region15: #{tpu_custom_call.1} parent=11 // pred_region
        _
      $region16: #{tpu_custom_call.1} parent=11 // pred_fallthru
        _
    $region12: #{tpu_custom_call.1} parent=5 // pred_fallthru
      _
    %p141 = scmp.lt.s32.totalorder %s10, 2
    // Predicated region
    $region17: #{tpu_custom_call.1} parent=5 // pred_check
      %p142 = pneg %p141
    $region18: #{tpu_custom_call.1} parent=5 // pred_check_branch
      %144 = sbr.rel (%p142) target = $region20
    $region19: #{tpu_custom_call.1} parent=5 // pred_region
      // Predicated region
      $region21: #{tpu_custom_call.1} parent=19 // pred_check
        %p145 = pneg %p44
      $region22: #{tpu_custom_call.1} parent=19 // pred_check_branch
        %147 = sbr.rel (%p145) target = $region24
      $region23: #{tpu_custom_call.1} parent=19 // pred_region
        %s148 = sadd.s32 %s17, %s18
        %p149 = scmp.lt.s32.totalorder %s148, 1
        %s150 = scalar_select %p149, %s148, 1
        %s151 = smul.addr %s150, 4
        %s152 = scalar_lea.vmem %s0, %s151
        %s153 = sadd.s32 %s17, %s18
      $region24: #{tpu_custom_call.1} parent=19 // pred_fallthru
        _
    $region20: #{tpu_custom_call.1} parent=5 // pred_fallthru
      _
    %p154 = scmp.le.s32.totalorder 1, %s10
    %p155 = scmp.lt.s32.totalorder %s10, 3
    %p156 = pnand %p154, %p155
    %p157 = pneg %p156
    // Predicated region
    $region25: #{tpu_custom_call.1} parent=5 // pred_check
      _
    $region26: #{tpu_custom_call.1} parent=5 // pred_check_branch
      %159 = sbr.rel (%p156) target = $region28
    $region27: #{tpu_custom_call.1} parent=5 // pred_region
      %s160 = ssub.s32 %s10, 1
      %s161 = sadd.s32 %s19, %s20
      %p162 = scmp.lt.s32.totalorder %s161, 1
      %s163 = scalar_select %p162, %s161, 1
      %s164 = smul.addr %s163, 4
      %s165 = scalar_lea.vmem %s0, %s164
      %p166 = pneg %p50
      %p167 = pneg %p47
      %p168 = pneg %p71
      %p169 = pneg %p68
      %p170 = pneg %p97
      %p171 = pneg %p94
      %p172 = scmp.lt.s32.totalorder %s19, 1
      %s173 = scalar_select %p172, %s19, 1
      %s174 = smul.addr %s173, 8
      %s175 = scalar_lea.vmem %s2, %s174
      %p176 = pneg %p123
      %p177 = pneg %p120
      %p178 = scmp.lt.s32.totalorder %s19, 1
      %s179 = scalar_select %p178, %s19, 1
      %s180 = smul.addr %s179, 8
      %s181 = scalar_lea.vmem %s3, %s180
      %s182 = sadd.s32 %s19, %s20
      %p183 = scmp.lt.s32.totalorder %s182, 1
      %s184 = scalar_select %p183, %s182, 1
      %s185 = smul.addr %s184, 4
      %s186 = scalar_lea.vmem %s0, %s185
      %s187 = sadd.s32 %s19, %s20
      %p188 = scmp.lt.s32.totalorder %s19, 1
      %s189 = scalar_select %p188, %s19, 1
      %s190 = smul.addr %s189, 8
      %s191 = scalar_lea.vmem %s2, %s190
      %p192 = scmp.lt.s32.totalorder %s19, 1
      %s193 = scalar_select %p192, %s19, 1
      %s194 = smul.addr %s193, 8
      %s195 = scalar_lea.vmem %s3, %s194
      %p196 = scmp.eq.s32.totalorder %s20, 0
      // Predicated region
      $region29: #{tpu_custom_call.1} parent=27 // pred_check
        %p197 = pneg %p196
      $region30: #{tpu_custom_call.1} parent=27 // pred_check_branch
        %199 = sbr.rel (%p197) target = $region32
      $region31: #{tpu_custom_call.1} parent=27 // pred_region
        %vm200 = vcmask 7168
        %201 = vst.msk [vmem:[%s191] sm:$0xff] %vm200, 0.0
        %202 = vst.msk [vmem:[%s195] sm:$0xff] %vm200, 0.0
      $region32: #{tpu_custom_call.1} parent=27 // pred_fallthru
        _
      %v203 = vld [vmem:[%s1] sm:$0xff]
      %v204 = vld [vmem:[%s1 + $0x8] sm:$0xff]
      %v205 = vld [vmem:[%s1 + $0x10] sm:$0xff]
      %v206 = vld [vmem:[%s186] sm:$0xf]
      %vm207 = vcmask 31744
      %v209 = vsel %vm207, %v203, 0
      %v212 = vsel %vm207, %v204, 0
      %v215 = vsel %vm207, %v205, 0
      %vm217 = vcmask 1043456
      %v219 = vsel %vm217, %v206, 0
      %221 = vmatprep.subr.mxu0 0.0
      %222 = vmatpush1.msra.mxu0 %v219
      %223 = vmatprep.subr.mxu0 0.0
      %224 = vmatpush1.msra.mxu0 0.0
      %225 = vmatprep.subr.mxu0 0.0
      %226 = vmatpush1.msra.mxu0 0.0
      %227 = vmatprep.subr.mxu0 0.0
      %228 = vmatpush1.msra.mxu0 0.0
      %229 = vmatprep.subr.mxu0 0.0
      %230 = vmatpush1.msra.mxu0 0.0
      %231 = vmatprep.subr.mxu0 0.0
      %232 = vmatpush1.msra.mxu0 0.0
      %233 = vmatprep.subr.mxu0 0.0
      %234 = vmatpush1.msra.mxu0 0.0
      %235 = vmatprep.subr.mxu0 0.0
      %236 = vmatpush1.msra.mxu0 0.0
      %237 = vmatprep.subr.mxu0 0.0
      %238 = vmatpush1.msra.mxu0 0.0
      %239 = vmatprep.subr.mxu0 0.0
      %240 = vmatpush1.msra.mxu0 0.0
      %241 = vmatprep.subr.mxu0 0.0
      %242 = vmatpush1.msra.mxu0 0.0
      %243 = vmatprep.subr.mxu0 0.0
      %244 = vmatpush1.msra.mxu0 0.0
      %245 = vmatprep.subr.mxu0 0.0
      %246 = vmatpush1.msra.mxu0 0.0
      %247 = vmatprep.subr.mxu0 0.0
      %248 = vmatpush1.msra.mxu0 0.0
      %249 = vmatprep.subr.mxu0 0.0
      %250 = vmatpush1.msra.mxu0 0.0
      %251 = vmatprep.subr.mxu0 0.0
      %252 = vmatpush1.msra.mxu0 0.0
      %253 = vmatprep.subr.mxu0 0.0
      %254 = vmatpush1.msra.mxu0 0.0
      %255 = vmatprep.subr.mxu0 0.0
      %256 = vmatpush1.msra.mxu0 0.0
      %257 = vmatprep.subr.mxu0 0.0
      %258 = vmatpush1.msra.mxu0 0.0
      %259 = vmatprep.subr.mxu0 0.0
      %260 = vmatpush1.msra.mxu0 0.0
      %261 = vmatprep.subr.mxu0 0.0
      %262 = vmatpush1.msra.mxu0 0.0
      %263 = vmatprep.subr.mxu0 0.0
      %264 = vmatpush1.msra.mxu0 0.0
      %265 = vmatprep.subr.mxu0 0.0
      %266 = vmatpush1.msra.mxu0 0.0
      %267 = vmatprep.subr.mxu0 0.0
      %268 = vmatpush1.msra.mxu0 0.0
      %269 = vmatprep.subr.mxu0 0.0
      %270 = vmatpush1.msra.mxu0 0.0
      %271 = vmatprep.subr.mxu0 0.0
      %272 = vmatpush1.msra.mxu0 0.0
      %273 = vmatprep.subr.mxu0 0.0
      %274 = vmatpush1.msra.mxu0 0.0
      %275 = vmatprep.subr.mxu0 0.0
      %276 = vmatpush1.msra.mxu0 0.0
      %277 = vmatprep.subr.mxu0 0.0
      %278 = vmatpush1.msra.mxu0 0.0
      %279 = vmatprep.subr.mxu0 0.0
      %280 = vmatpush1.msra.mxu0 0.0
      %281 = vmatprep.subr.mxu0 0.0
      %282 = vmatpush1.msra.mxu0 0.0
      %283 = vmatprep.subr.mxu0 0.0
      %284 = vmatpush1.msra.mxu0 0.0
      %285 = vmatprep.mubr.f32.mxu0 0.0
      %286 = vmatmul.mubr.f32.gmra.mrb[0].mxu0 %v209
      %v287 = vpop.f32.mrb[0].mxu0
      %v288 = vadd.f32 0.0, %v287
      %v289 = vpop.f32.mrb[0].mxu0
      %290 = vmatprep.mubr.f32.mxu0 0.0
      %291 = vmatmul.mubr.f32.gmra.mrb[0].mxu0 %v212
      %v292 = vpop.f32.mrb[0].mxu0
      %v293 = vadd.f32 0.0, %v292
      %v294 = vpop.f32.mrb[0].mxu0
      %295 = vmatprep.mubr.f32.mxu0 0.0
      %296 = vmatmul.mubr.f32.gmra.mrb[0].mxu0 %v215
      %v297 = vpop.f32.mrb[0].mxu0
      %v298 = vadd.f32 0.0, %v297
      %v299 = vpop.f32.mrb[0].mxu0
      %300 = vdwg.mxu0
      %v301 = vlaneseq
      %v302 = vand.u32 %v301, 127
      %vm303 = vcmp.eq.s32.totalorder %v302, 0
      %304 = vrot.lane.b32.xlu0 %v288, 1
      %v305 = vpop.permute.xlu0 %304
      %v306 = vsel %vm303, 0.0, %v305
      %vm307 = vcmp.eq.s32.totalorder %v302, 15
      %308 = vrot.lane.b32.xlu0 %v298, 127
      %v309 = vpop.permute.xlu0 %308
      %v310 = vsel %vm307, 0.0, %v309
      %v311 = vadd.f32 %v306, %v293
      %v312 = vadd.f32 %v311, %v310
      %vm313 = vcmp.lt.s32.totalorder %v302, 16
      %v314 = vsel %vm313, %v312, 0.0
      %v315 = vld [vmem:[%s191] sm:$0xff]
      %316 = vadd.xlane.f32.xlu0 %v314
      %v317 = vpop.xlane.xlu0 %316
      %v318 = vadd.f32 %v315, %v317
      %vm319 = vcmask 7168
      %320 = vst.msk [vmem:[%s191] sm:$0xff] %vm319, %v318
      %v321 = vld [vmem:[%s195] sm:$0xff]
      %v322 = vmul.f32 %v314, %v314
      %323 = vadd.xlane.f32.xlu0 %v322
      %v324 = vpop.xlane.xlu0 %323
      %v325 = vadd.f32 %v321, %v324
      %326 = vst.msk [vmem:[%s195] sm:$0xff] %vm319, %v325
      %p327 = scmp.lt.s32.totalorder %s19, 1
      %s328 = scalar_select %p327, %s19, 1
      %s329 = smul.addr %s328, 8
      %s330 = scalar_lea.vmem %s2, %s329
      %p331 = scmp.lt.s32.totalorder %s19, 1
      %s332 = scalar_select %p331, %s19, 1
      %s333 = smul.addr %s332, 8
      %s334 = scalar_lea.vmem %s3, %s333
      // Predicated region
      $region33: #{tpu_custom_call.1} parent=27 // pred_check
        %p335 = pneg %p94
      $region34: #{tpu_custom_call.1} parent=27 // pred_check_branch
        %337 = sbr.rel (%p335) target = $region36
      $region35: #{tpu_custom_call.1} parent=27 // pred_region
        _
      $region36: #{tpu_custom_call.1} parent=27 // pred_fallthru
        _
      // Predicated region
      $region37: #{tpu_custom_call.1} parent=27 // pred_check
        %p338 = pneg %p120
      $region38: #{tpu_custom_call.1} parent=27 // pred_check_branch
        %340 = sbr.rel (%p338) target = $region40
      $region39: #{tpu_custom_call.1} parent=27 // pred_region
        _
      $region40: #{tpu_custom_call.1} parent=27 // pred_fallthru
        _
    $region28: #{tpu_custom_call.1} parent=5 // pred_fallthru
      _
    %p341 = scmp.le.s32.totalorder 2, %s10
    // Predicated region
    $region41: #{tpu_custom_call.1} parent=5 // pred_check
      %p342 = pneg %p341
    $region42: #{tpu_custom_call.1} parent=5 // pred_check_branch
      %344 = sbr.rel (%p342) target = $region44
    $region43: #{tpu_custom_call.1} parent=5 // pred_region
      %s345 = ssub.s32 %s10, 2
      // Predicated region
      $region45: #{tpu_custom_call.1} parent=43 // pred_check
        %p346 = pneg %p100
      $region46: #{tpu_custom_call.1} parent=43 // pred_check_branch
        %348 = sbr.rel (%p346) target = $region48
      $region47: #{tpu_custom_call.1} parent=43 // pred_region
        %p349 = scmp.lt.s32.totalorder %s21, 1
        %s350 = scalar_select %p349, %s21, 1
        %s351 = smul.addr %s350, 8
        %s352 = scalar_lea.vmem %s2, %s351
      $region48: #{tpu_custom_call.1} parent=43 // pred_fallthru
        _
      // Predicated region
      $region49: #{tpu_custom_call.1} parent=43 // pred_check
        %p353 = pneg %p126
      $region50: #{tpu_custom_call.1} parent=43 // pred_check_branch
        %355 = sbr.rel (%p353) target = $region52
      $region51: #{tpu_custom_call.1} parent=43 // pred_region
        %p356 = scmp.lt.s32.totalorder %s21, 1
        %s357 = scalar_select %p356, %s21, 1
        %s358 = smul.addr %s357, 8
        %s359 = scalar_lea.vmem %s3, %s358
      $region52: #{tpu_custom_call.1} parent=43 // pred_fallthru
        _
    $region44: #{tpu_custom_call.1} parent=5 // pred_fallthru
      _
  $region6: #{tpu_custom_call.1} parent=0 // loop_footer
    %s14 = sadd.s32 1, %s10
  $region7: #{tpu_custom_call.1} parent=0 // loop_footer_branch
    %9 = sbr.rel target = $region3
  $region8: #{tpu_custom_call.1} parent=0 // loop_exit
    _

</llo_original>
